<compile_context>
chip_gen: v7x
topology: tpu7x:2x2x1
jax: 0.10.0
libtpu: 0.0.40
codegen_flags: <defaults>
</compile_context>

<pallas_src>
from functools import partial

import jax
import jax.numpy as jnp
from jax.experimental import pallas as pl
from jax.experimental.pallas import tpu as pltpu


def _round_up(x, m):
    return (x + m - 1) // m * m


# ----------------------------------------------------------------------------
# Fused focal-loss kernel (one grid step = one row tile, fully independent).
#   logits_ref : (TM, C)  native-dtype logits (class axis = full array dim)
#   tgt_ref    : (TM, 1)  i32 target class index per row
#   loss_ref   : (TM, 1)  f32 per-row focal loss (rows >= n_valid -> 0)
# ----------------------------------------------------------------------------
def _focal_loss_kernel(logits_ref, tgt_ref, loss_ref, *, alpha, gamma, n_valid):
    i = pl.program_id(0)

    x = logits_ref[...].astype(jnp.float32)                 # (TM, C)
    tgt = tgt_ref[...]                                      # (TM, 1) i32
    tm, c = x.shape

    # Numerically stable softmax cross-entropy, all relative to the row max.
    m = jnp.max(x, axis=-1, keepdims=True)                  # (TM, 1)
    xm = x - m                                              # (TM, C), <= 0
    sum_e = jnp.sum(jnp.exp(xm), axis=-1, keepdims=True)    # (TM, 1)

    # Target-class gather via a broadcast one-hot built from a (1, C) iota.
    col = jax.lax.broadcasted_iota(jnp.int32, (1, c), 1)    # (1, C)
    onehot = col == tgt                                     # (TM, C) bool
    t_shift = jnp.sum(jnp.where(onehot, xm, 0.0),
                      axis=-1, keepdims=True)               # (TM, 1) = x_t - m

    ce = jnp.log(sum_e) - t_shift                           # (TM, 1), >= 0
    pt = jnp.exp(-ce)
    one_minus_pt = jnp.maximum(1.0 - pt, 0.0)               # guard for pow
    if gamma == 2:
        w = one_minus_pt * one_minus_pt
    elif float(gamma) == int(gamma) and gamma >= 0:
        w = jax.lax.integer_pow(one_minus_pt, int(gamma))
    else:
        w = one_minus_pt ** gamma
    fl = alpha * w * ce                                     # (TM, 1)

    # Mask rows beyond the true batch size (ragged / garbage tail rows),
    # applied AFTER all arithmetic so NaN/Inf in garbage rows never escapes.
    row = i * tm + jax.lax.broadcasted_iota(jnp.int32, (tm, 1), 0)
    loss_ref[...] = jnp.where(row < n_valid, fl, 0.0)


def focal_loss(inputs, targets, alpha=0.25, gamma=2, reduce=True):
    """Focal loss matching the PyTorch module (logits=False path).

    inputs  : (N, C) float logits (any float dtype; streamed in native dtype)
    targets : (N,)   int class indices
    Returns a scalar mean if reduce=True, else per-sample losses (N,).
    """
    N, C = inputs.shape

    # Row tile: ~3 MiB (f32-equivalent) per block for good HBM roofline, but
    # capped at 2048 rows so the lane-padded (TM, 1) column temporaries and
    # double-buffered blocks stay well inside v7x's smaller VMEM.
    TM = max(8, min(2048, ((3 << 20) // (4 * max(C, 1))) // 8 * 8))
    TM = min(TM, _round_up(N, 8))
    G = -(-N // TM)                     # cdiv
    n_rows_out = G * TM

    t = targets.astype(jnp.int32).reshape(N, 1)

    losses = pl.pallas_call(
        partial(_focal_loss_kernel, alpha=float(alpha), gamma=gamma, n_valid=N),
        out_shape=jax.ShapeDtypeStruct((n_rows_out, 1), jnp.float32),
        grid_spec=pltpu.PrefetchScalarGridSpec(
            num_scalar_prefetch=0,
            grid=(G,),
            in_specs=[
                pl.BlockSpec((TM, C), lambda i: (i, 0)),   # class axis = full C
                pl.BlockSpec((TM, 1), lambda i: (i, 0)),
            ],
            out_specs=pl.BlockSpec((TM, 1), lambda i: (i, 0)),
        ),
        compiler_params=pltpu.CompilerParams(
            dimension_semantics=("parallel",),   # no carried state across tiles
            vmem_limit_bytes=32 * 1024 * 1024),
    )(inputs, t)

    per = losses[:N, 0]
    if reduce:
        # Tiny XLA reduction over N floats; keeps the grid axis parallel.
        return jnp.sum(per) * (1.0 / N)
    return per


if __name__ == "__main__":
    key = jax.random.PRNGKey(0)
    k1, k2 = jax.random.split(key)

    # Small shapes implied by the module: a batch of logits + class targets.
    N, C = 8, 32
    logits = jax.random.normal(k1, (N, C), jnp.float32)
    targets = jax.random.randint(k2, (N,), 0, C, dtype=jnp.int32)

    mean_loss = jax.block_until_ready(focal_loss(logits, targets))            # reduce=True
    per_loss = jax.block_until_ready(focal_loss(logits, targets, reduce=False))

    # Pure-JAX reference (same math as the PyTorch module).
    logp = jax.nn.log_softmax(logits, axis=-1)
    ce = -jnp.take_along_axis(logp, targets[:, None], axis=-1)[:, 0]
    pt = jnp.exp(-ce)
    ref_per = 0.25 * (1.0 - pt) ** 2 * ce
    ref_mean = jnp.mean(ref_per)

    assert per_loss.shape == (N,)
    assert mean_loss.shape == ()
    assert jnp.all(jnp.isfinite(per_loss)) and jnp.isfinite(mean_loss)
    assert jnp.allclose(per_loss, ref_per, rtol=1e-5, atol=1e-6)
    assert jnp.allclose(mean_loss, ref_mean, rtol=1e-5, atol=1e-6)
    print("KERNEL_OK")
</pallas_src>

<mosaic_0001>
module attributes {stable_mosaic.version = 11 : i64} {
  func.func @_focal_loss_kernel(%arg0: i32, %arg1: memref<8x32xf32, #tpu.memory_space<vmem>>, %arg2: memref<8x1xi32, #tpu.memory_space<vmem>>, %arg3: memref<8x1xf32, #tpu.memory_space<vmem>>) attributes {dimension_semantics = [#tpu.dimension_semantics<parallel>], iteration_bounds = array<i64: 1>, scalar_prefetch = 0 : i64, scratch_operands = 0 : i64, tpu.core_type = #tpu.core_type<tc>, window_params = [{transform_indices = @transform_0, window_bounds = array<i64: 8, 32>}, {transform_indices = @transform_1, window_bounds = array<i64: 8, 1>}, {transform_indices = @transform_2, window_bounds = array<i64: 8, 1>}]} {
    %c0 = arith.constant 0 : index
    %c0_0 = arith.constant 0 : index
    %0 = vector.load %arg1[%c0, %c0_0] : memref<8x32xf32, #tpu.memory_space<vmem>>, vector<8x32xf32>
    %c0_1 = arith.constant 0 : index
    %c0_2 = arith.constant 0 : index
    %1 = vector.load %arg2[%c0_1, %c0_2] : memref<8x1xi32, #tpu.memory_space<vmem>>, vector<8x1xi32>
    %cst = arith.constant dense<0xFF800000> : vector<8xf32>
    %2 = vector.multi_reduction <maximumf>, %0, %cst [1] : vector<8x32xf32> to vector<8xf32>
    %3 = vector.shape_cast %2 : vector<8xf32> to vector<8x1xf32>
    %4 = vector.broadcast %3 : vector<8x1xf32> to vector<8x32xf32>
    %5 = arith.subf %0, %4 : vector<8x32xf32>
    %6 = math.exp %5 : vector<8x32xf32>
    %cst_3 = arith.constant dense<0.000000e+00> : vector<8xf32>
    %7 = vector.multi_reduction <add>, %6, %cst_3 [1] : vector<8x32xf32> to vector<8xf32>
    %8 = vector.shape_cast %7 : vector<8xf32> to vector<8x1xf32>
    %9 = tpu.iota {dimensions = array<i32: 1>} : vector<1x32xi32>
    %10 = vector.broadcast %9 : vector<1x32xi32> to vector<8x32xi32>
    %11 = vector.broadcast %1 : vector<8x1xi32> to vector<8x32xi32>
    %12 = arith.cmpi eq, %10, %11 : vector<8x32xi32>
    %cst_4 = arith.constant 0.000000e+00 : f32
    %13 = vector.broadcast %cst_4 : f32 to vector<8x32xf32>
    %14 = arith.select %12, %5, %13 : vector<8x32xi1>, vector<8x32xf32>
    %cst_5 = arith.constant dense<0.000000e+00> : vector<8xf32>
    %15 = vector.multi_reduction <add>, %14, %cst_5 [1] : vector<8x32xf32> to vector<8xf32>
    %16 = vector.shape_cast %15 : vector<8xf32> to vector<8x1xf32>
    %17 = math.log %8 : vector<8x1xf32>
    %18 = arith.subf %17, %16 : vector<8x1xf32>
    %cst_6 = arith.constant 0.000000e+00 : f32
    %19 = vector.broadcast %cst_6 : f32 to vector<8x1xf32>
    %20 = arith.subf %19, %18 : vector<8x1xf32>
    %21 = math.exp %20 : vector<8x1xf32>
    %cst_7 = arith.constant 1.000000e+00 : f32
    %22 = vector.broadcast %cst_7 : f32 to vector<8x1xf32>
    %23 = arith.subf %22, %21 : vector<8x1xf32>
    %cst_8 = arith.constant 0.000000e+00 : f32
    %24 = vector.broadcast %cst_8 : f32 to vector<8x1xf32>
    %25 = arith.maximumf %23, %24 : vector<8x1xf32>
    %26 = arith.mulf %25, %25 : vector<8x1xf32>
    %cst_9 = arith.constant 2.500000e-01 : f32
    %27 = vector.broadcast %cst_9 : f32 to vector<8x1xf32>
    %28 = arith.mulf %27, %26 : vector<8x1xf32>
    %29 = arith.mulf %28, %18 : vector<8x1xf32>
    %c8_i32 = arith.constant 8 : i32
    %30 = arith.muli %arg0, %c8_i32 : i32
    %31 = tpu.iota {dimensions = array<i32: 0>} : vector<8x1xi32>
    %32 = vector.broadcast %30 : i32 to vector<8x1xi32>
    %33 = arith.addi %32, %31 : vector<8x1xi32>
    %c8_i32_10 = arith.constant 8 : i32
    %34 = vector.broadcast %c8_i32_10 : i32 to vector<8x1xi32>
    %35 = arith.cmpi slt, %33, %34 : vector<8x1xi32>
    %cst_11 = arith.constant 0.000000e+00 : f32
    %36 = vector.broadcast %cst_11 : f32 to vector<8x1xf32>
    %37 = arith.select %35, %29, %36 : vector<8x1xi1>, vector<8x1xf32>
    %c0_12 = arith.constant 0 : index
    %c0_13 = arith.constant 0 : index
    %38 = vector.load %arg3[%c0_12, %c0_13] : memref<8x1xf32, #tpu.memory_space<vmem>>, vector<8x1xf32>
    tpu.vector_store %arg3[%c0_12, %c0_13], %37 {strides = array<i32>} : memref<8x1xf32, #tpu.memory_space<vmem>>, vector<8x1xf32>,
    return
  }
  func.func @transform_0(%arg0: i32) -> (i32, i32) {
    %c0_i32 = arith.constant 0 : i32
    %c0_i32_0 = arith.constant 0 : i32
    return %arg0, %c0_i32 : i32, i32
  }
  func.func @transform_1(%arg0: i32) -> (i32, i32) {
    %c0_i32 = arith.constant 0 : i32
    %c0_i32_0 = arith.constant 0 : i32
    return %arg0, %c0_i32 : i32, i32
  }
  func.func @transform_2(%arg0: i32) -> (i32, i32) {
    %c0_i32 = arith.constant 0 : i32
    %c0_i32_0 = arith.constant 0 : i32
    return %arg0, %c0_i32 : i32, i32
  }
}

</mosaic_0001>

<llo_original>
// kernel: tpu_custom_call.1
$region0: #{tpu_custom_call.1}
  #allocation0 [shape = 'u32[]', space=smem, size = 0x4, offset = 0x4, fixed_abs, tag = 'smem constant byte address 0x4 - core index']
  #allocation1 [shape = 'u32[144,128]{1,0:T(1,128)}', space=vmem, size = 0x12000, scoped, tag = 'internal scratch']
  %s0 = inlined_call_operand.vmem [shape: f32[8,32], index: 0, kind: input, shape index: {}]
  %s1 = inlined_call_operand.vmem [shape: s32[8,1], index: 1, kind: input, shape index: {}]
  %s2 = inlined_call_operand.vmem [shape: f32[8,1], index: 2, kind: output, shape index: {}]
  %s3 = sld [smem:[#allocation0]]
  $region18: #{tpu_custom_call.1} parent=0
    _
  %s5 = ssub.s32 1, %s3
  %s6 = scalar_select 0, %s5, %s3
  // Predicated region
  $region2: #{tpu_custom_call.1} parent=0 // pred_check
    _
  $region3: #{tpu_custom_call.1} parent=0 // pred_check_branch
    %8 = sbr.rel (0) target = $region5
  $region4: #{tpu_custom_call.1} parent=0 // pred_region
    _
  $region5: #{tpu_custom_call.1} parent=0 // pred_fallthru
    _
  // Predicated region
  $region6: #{tpu_custom_call.1} parent=0 // pred_check
    _
  $region7: #{tpu_custom_call.1} parent=0 // pred_check_branch
    %10 = sbr.rel (0) target = $region9
  $region8: #{tpu_custom_call.1} parent=0 // pred_region
    _
  $region9: #{tpu_custom_call.1} parent=0 // pred_fallthru
    _
  %v11 = vld [vmem:[%s0] sm:$0xff]
  %v12 = vld [vmem:[%s1] sm:$0xff]
  %vm13 = vcmask 261120
  %v14 = vsel %vm13, %v11, -inf
  %15 = vmax.xlane.f32.xlu0 %v14
  %v16 = vpop.xlane.xlu0 %15
  %v17 = vsub.f32 %v11, %v16
  %v18 = vmul.f32 %v17, 1.442695
  %v19 = vpow.pop %v18
  %v20 = vsel %vm13, %v19, 0.0
  %21 = vadd.xlane.f32.xlu0 %v20
  %v22 = vpop.xlane.xlu0 %21
  %v23 = vlaneseq
  %v24 = vand.u32 %v23, 127
  %25 = vset.pattern.permute.xlu0 0
  %26 = vperm.xlu0 %25, %v12
  %v27 = vpop.permute.xlu0 %26
  %vm28 = vcmp.eq.s32.totalorder %v24, %v27
  %v29 = vsel %vm28, %v17, 0.0
  %v30 = vsel %vm13, %v29, 0.0
  %31 = vadd.xlane.f32.xlu0 %v30
  %v32 = vpop.xlane.xlu0 %31
  %v33 = vlog2.pop %v22
  %v34 = vmul.f32 %v33, 0.6931472
  %v35 = vsub.f32 %v34, %v32
  %v36 = vsub.f32 0.0, %v35
  %v37 = vmul.f32 %v36, 1.442695
  %v38 = vpow.pop %v37
  %v39 = vsub.f32 1.0, %v38
  %v40 = vmax.f32 %v39, 0.0
  %v41 = vmul.f32 %v40, %v40
  %v42 = vmul.f32 %v41, 0.25
  %v43 = vmul.f32 %v42, %v35
  %s44 = smul.u32 0, 8
  %v45 = vlaneseq
  %v46 = vshrl.u32 %v45, 7
  %v47 = vstv %s44
  %v48 = vadd.s32 %v47, %v46
  %vm49 = vcmp.lt.s32.totalorder %v48, 8
  %v50 = vsel %vm49, %v43, 0.0
  %vm51 = vcmask 7168
  %52 = vst.msk [vmem:[%s2] sm:$0xff] %vm51, %v50
  // Predicated region
  $region10: #{tpu_custom_call.1} parent=0 // pred_check
    _
  $region11: #{tpu_custom_call.1} parent=0 // pred_check_branch
    %54 = sbr.rel (0) target = $region13
  $region12: #{tpu_custom_call.1} parent=0 // pred_region
    _
  $region13: #{tpu_custom_call.1} parent=0 // pred_fallthru
    _
  // Predicated region
  $region14: #{tpu_custom_call.1} parent=0 // pred_check
    _
  $region15: #{tpu_custom_call.1} parent=0 // pred_check_branch
    %56 = sbr.rel (0) target = $region17
  $region16: #{tpu_custom_call.1} parent=0 // pred_region
    _
  $region17: #{tpu_custom_call.1} parent=0 // pred_fallthru
    _

</llo_original>
